<compile_context>
chip_gen: v7x
topology: tpu7x:2x2x1
jax: 0.10.0
libtpu: 0.0.40
codegen_flags: <defaults>
</compile_context>

<pallas_src>
import functools

import jax
import jax.numpy as jnp
from jax.experimental import pallas as pl
from jax.experimental.pallas import tpu as pltpu


# ------------------------------------------------------------------ kernels


def _lm_head_kernel_bias(x_ref, wt_ref, b_ref, o_ref):
    # x_ref: (S, D) bf16, wt_ref: (D, tv) bf16, b_ref: (1, tv) f32, o_ref: (S, tv) bf16
    logits = jnp.dot(x_ref[...], wt_ref[...], preferred_element_type=jnp.float32)
    o_ref[...] = (logits + b_ref[...]).astype(o_ref.dtype)


def _lm_head_kernel_nobias(x_ref, wt_ref, o_ref):
    logits = jnp.dot(x_ref[...], wt_ref[...], preferred_element_type=jnp.float32)
    o_ref[...] = logits.astype(o_ref.dtype)


# ------------------------------------------------------- sizing / param prep


def _vmem_capacity_bytes() -> int:
    """Physical per-TensorCore VMEM (v5e/v6e: 128 MiB, v7x: 64 MiB)."""
    try:
        return int(pltpu.get_tpu_info().vmem_capacity_bytes)
    except Exception:
        return 64 << 20  # conservative default (v7x)


def choose_block_v(embedding_dim, vocab_size, *, num_seqs_hint=256,
                   weight_bytes=2, act_bytes=2, max_block_v=4096):
    """Pick the largest vocab tile that fits this generation's VMEM.

    Per-step footprint model (double-buffering counted explicitly):
      2 * D * bv * weight_bytes     weight tile (double-buffered)
      2 * S * bv * act_bytes        output tile (double-buffered)
      S * bv * 4                    f32 logits intermediate
      2 * bv * 4                    bias tile
      2 * S * D * act_bytes         resident x
    """
    vmem_cap = _vmem_capacity_bytes()
    budget = int(vmem_cap * 0.75)  # headroom for Mosaic internal scratch
    s = max(int(num_seqs_hint), 8)
    per_bv = 2 * embedding_dim * weight_bytes + 2 * s * act_bytes + s * 4 + 8
    fixed = 2 * s * embedding_dim * act_bytes
    bv = max(128, (budget - fixed) // per_bv)
    bv = min(int(bv), max_block_v)
    bv = (bv // 128) * 128
    vocab_pad128 = pl.cdiv(vocab_size, 128) * 128
    return int(max(128, min(bv, vocab_pad128)))


def prepare_lm_head_params(weight, bias, block_v):
    """One-time parameter prep.

    weight [vocab, dim] (module layout) -> [num_tiles, dim, block_v] with the
    vocab axis padded to a tile multiple, so each vocab tile is a single
    contiguous HBM read of an MXU-native, lane-dense [K, N] RHS.
    bias (f32 or None) -> [1, num_tiles * block_v] padded with zeros.
    """
    vocab_size, emb_dim = weight.shape
    num_tiles = pl.cdiv(vocab_size, block_v)
    vocab_padded = num_tiles * block_v
    w = jnp.pad(weight, ((0, vocab_padded - vocab_size), (0, 0)))
    w_blocked = jnp.transpose(w.reshape(num_tiles, block_v, emb_dim), (0, 2, 1))
    if bias is None:
        return w_blocked, None
    b = jnp.pad(bias.astype(jnp.float32), (0, vocab_padded - vocab_size))
    return w_blocked, b.reshape(1, vocab_padded)


# ------------------------------------------------------------------ wrapper


@functools.partial(jax.jit, static_argnames=("vocab_size", "block_v"))
def parallel_lm_head(x, weight_blocked, bias2d, cu_seqlens_q, *, vocab_size,
                     block_v):
    """ParallelLMHead.forward, prefill path, tp_size == 1.

    x:              [num_tokens, embedding_dim]           bf16 hidden states
    weight_blocked: [num_tiles, embedding_dim, block_v]   bf16, see
                    prepare_lm_head_params (one-time prep)
    bias2d:         [1, num_tiles * block_v] f32, or None
    cu_seqlens_q:   [num_seqs + 1] int32 cumulative sequence lengths
    returns:        [num_seqs, vocab_size] bf16 logits
    """
    # --- prefill last-token selection (tiny gather, plain-JAX glue) ---
    last_indices = cu_seqlens_q[1:] - 1
    # TODO(synk): zero-length sequences give index -1, which follows JAX gather
    #             clamping rather than torch's x[-1] wrap; guard upstream.
    x_last = jnp.take(x, last_indices, axis=0)  # [num_seqs, D]

    num_seqs, emb_dim = x_last.shape
    num_tiles, emb_dim_w, bv = weight_blocked.shape
    assert emb_dim == emb_dim_w and bv == block_v, "bad prepared weight layout"
    vocab_padded = num_tiles * block_v
    out_dtype = x_last.dtype

    if num_seqs == 0:  # empty prefill: nothing to do
        return jnp.zeros((0, vocab_size), dtype=out_dtype)

    # --- VMEM accounting (double-buffering explicit, f32 intermediate
    #     included, clamped to physical per-TC VMEM) ---
    w_bytes = weight_blocked.dtype.itemsize
    x_bytes = x_last.dtype.itemsize
    o_bytes = jnp.dtype(out_dtype).itemsize
    needed = (
        2 * emb_dim * block_v * w_bytes          # weight tile, double-buffered
        + 2 * num_seqs * emb_dim * x_bytes       # resident x (2x, conservative)
        + 2 * num_seqs * block_v * o_bytes       # output tile, double-buffered
        + num_seqs * block_v * 4                 # f32 logits intermediate
        + (2 * block_v * 4 if bias2d is not None else 0)
    )
    vmem_cap = _vmem_capacity_bytes()
    vmem_limit = int(max(min(needed + (8 << 20), vmem_cap - (2 << 20)),
                         16 << 20))

    compiler_params = pltpu.CompilerParams(
        dimension_semantics=("parallel",),  # vocab tiles shard across v7x TCs
        vmem_limit_bytes=vmem_limit,
    )

    # x: small LHS block, resident across all vocab tiles.
    x_spec = pl.BlockSpec((num_seqs, emb_dim), lambda j: (0, 0))
    # weight: one contiguous, lane-dense [K, N] vocab tile per grid step.
    w_spec = pl.BlockSpec((None, emb_dim, block_v), lambda j: (j, 0, 0))
    # output: matching lane-dense vocab tile.
    o_spec = pl.BlockSpec((num_seqs, block_v), lambda j: (0, j))

    if bias2d is not None:
        b_spec = pl.BlockSpec((1, block_v), lambda j: (0, j))
        out = pl.pallas_call(
            _lm_head_kernel_bias,
            out_shape=jax.ShapeDtypeStruct((num_seqs, vocab_padded), out_dtype),
            grid_spec=pltpu.PrefetchScalarGridSpec(
                num_scalar_prefetch=0,
                grid=(num_tiles,),
                in_specs=[x_spec, w_spec, b_spec],
                out_specs=o_spec,
            ),
            compiler_params=compiler_params,
        )(x_last, weight_blocked, bias2d)
    else:
        # bias=None: specialized kernel, no zero-bias streamed from HBM.
        out = pl.pallas_call(
            _lm_head_kernel_nobias,
            out_shape=jax.ShapeDtypeStruct((num_seqs, vocab_padded), out_dtype),
            grid_spec=pltpu.PrefetchScalarGridSpec(
                num_scalar_prefetch=0,
                grid=(num_tiles,),
                in_specs=[x_spec, w_spec],
                out_specs=o_spec,
            ),
            compiler_params=compiler_params,
        )(x_last, weight_blocked)

    if vocab_padded != vocab_size:
        out = out[:, :vocab_size]
    return out


# ---------------------------------------------------------------- reference


def _reference(x, weight, bias, cu_seqlens_q):
    last_indices = cu_seqlens_q[1:] - 1
    x_last = jnp.take(x, last_indices, axis=0)
    logits = jnp.dot(x_last.astype(jnp.float32), weight.astype(jnp.float32).T)
    if bias is not None:
        logits = logits + bias.astype(jnp.float32)
    return logits.astype(x.dtype)


if __name__ == "__main__":
    key = jax.random.PRNGKey(0)
    k_x, k_w, k_b = jax.random.split(key, 3)

    # Small shapes consistent with the module.  vocab_size deliberately NOT a
    # multiple of 128 to exercise vocab padding + final slice.
    vocab_size = 1000
    embedding_dim = 128
    num_seqs = 3
    seq_len = 8
    num_tokens = num_seqs * seq_len  # prefill: flattened tokens of all seqs

    x = (jax.random.normal(k_x, (num_tokens, embedding_dim), jnp.float32)
         * 0.1).astype(jnp.bfloat16)
    # Synthetic parameters (no checkpoint load), module layout [vocab, dim].
    weight = (jax.random.normal(k_w, (vocab_size, embedding_dim), jnp.float32)
              * 0.05).astype(jnp.bfloat16)
    bias = jax.random.normal(k_b, (vocab_size,), jnp.float32) * 0.01
    cu_seqlens_q = jnp.arange(0, num_tokens + 1, seq_len, dtype=jnp.int32)

    # Generation-aware vocab tile + one-time parameter prep ([T, D, block_v]).
    block_v = choose_block_v(embedding_dim, vocab_size, num_seqs_hint=num_seqs)
    w_blocked, bias2d = prepare_lm_head_params(weight, bias, block_v)
    jax.block_until_ready(w_blocked)

    # --- with bias ---
    logits = parallel_lm_head(x, w_blocked, bias2d, cu_seqlens_q,
                              vocab_size=vocab_size, block_v=block_v)
    jax.block_until_ready(logits)
    ref = _reference(x, weight, bias, cu_seqlens_q)
    assert logits.shape == (num_seqs, vocab_size)
    assert logits.dtype == jnp.bfloat16
    err = float(jnp.max(jnp.abs(logits.astype(jnp.float32)
                                - ref.astype(jnp.float32))))
    assert err < 5e-2, f"mismatch vs reference (bias): {err}"

    # --- bias=None path (specialized kernel, no zero-bias stream) ---
    logits_nb = parallel_lm_head(x, w_blocked, None, cu_seqlens_q,
                                 vocab_size=vocab_size, block_v=block_v)
    jax.block_until_ready(logits_nb)
    ref_nb = _reference(x, weight, None, cu_seqlens_q)
    err_nb = float(jnp.max(jnp.abs(logits_nb.astype(jnp.float32)
                                   - ref_nb.astype(jnp.float32))))
    assert err_nb < 5e-2, f"mismatch vs reference (no bias): {err_nb}"

    print("KERNEL_OK")
</pallas_src>

<mosaic_0001>
module attributes {stable_mosaic.version = 11 : i64} {
  func.func @_lm_head_kernel_bias(%arg0: i32, %arg1: memref<3x128xbf16, #tpu.memory_space<vmem>>, %arg2: memref<1x128x1024xbf16, #tpu.memory_space<vmem>>, %arg3: memref<1x1024xf32, #tpu.memory_space<vmem>>, %arg4: memref<3x1024xbf16, #tpu.memory_space<vmem>>) attributes {dimension_semantics = [#tpu.dimension_semantics<parallel>], iteration_bounds = array<i64: 1>, scalar_prefetch = 0 : i64, scratch_operands = 0 : i64, tpu.core_type = #tpu.core_type<tc>, window_params = [{pipeline_mode = #tpu.pipeline_mode<synchronous>, transform_indices = @transform_0, window_bounds = array<i64: 3, 128>}, {transform_indices = @transform_1, window_bounds = array<i64: 1, 128, 1024>}, {transform_indices = @transform_2, window_bounds = array<i64: 1, 1024>}, {transform_indices = @transform_3, window_bounds = array<i64: 3, 1024>}]} {
    %c0 = arith.constant 0 : index
    %c0_0 = arith.constant 0 : index
    %0 = vector.load %arg1[%c0, %c0_0] : memref<3x128xbf16, #tpu.memory_space<vmem>>, vector<3x128xbf16>
    %c0_1 = arith.constant 0 : index
    %c0_2 = arith.constant 0 : index
    %c0_3 = arith.constant 0 : index
    %1 = vector.load %arg2[%c0_1, %c0_2, %c0_3] : memref<1x128x1024xbf16, #tpu.memory_space<vmem>>, vector<1x128x1024xbf16>
    %2 = vector.shape_cast %1 : vector<1x128x1024xbf16> to vector<128x1024xbf16>
    %cst = arith.constant dense<0.000000e+00> : vector<3x1024xf32>
    %3 = tpu.matmul %0, %2, %cst {dimension_numbers = #tpu.dot_dimension_numbers<[1], [0], [0], [1], [0, 0, 1, 1], [], []>} : vector<3x128xbf16>, vector<128x1024xbf16>, vector<3x1024xf32> -> vector<3x1024xf32>
    %c0_4 = arith.constant 0 : index
    %c0_5 = arith.constant 0 : index
    %4 = vector.load %arg3[%c0_4, %c0_5] : memref<1x1024xf32, #tpu.memory_space<vmem>>, vector<1x1024xf32>
    %5 = vector.broadcast %4 : vector<1x1024xf32> to vector<3x1024xf32>
    %6 = arith.addf %3, %5 : vector<3x1024xf32>
    %7 = arith.truncf %6 : vector<3x1024xf32> to vector<3x1024xbf16>
    %c0_6 = arith.constant 0 : index
    %c0_7 = arith.constant 0 : index
    %8 = vector.load %arg4[%c0_6, %c0_7] : memref<3x1024xbf16, #tpu.memory_space<vmem>>, vector<3x1024xbf16>
    tpu.vector_store %arg4[%c0_6, %c0_7], %7 {strides = array<i32>} : memref<3x1024xbf16, #tpu.memory_space<vmem>>, vector<3x1024xbf16>,
    return
  }
  func.func @transform_0(%arg0: i32) -> (i32, i32) {
    %c0_i32 = arith.constant 0 : i32
    %c0_i32_0 = arith.constant 0 : i32
    %c0_i32_1 = arith.constant 0 : i32
    return %c0_i32, %c0_i32_0 : i32, i32
  }
  func.func @transform_1(%arg0: i32) -> (i32, i32, i32) {
    %c0_i32 = arith.constant 0 : i32
    %c0_i32_0 = arith.constant 0 : i32
    %c0_i32_1 = arith.constant 0 : i32
    return %arg0, %c0_i32, %c0_i32_0 : i32, i32, i32
  }
  func.func @transform_2(%arg0: i32) -> (i32, i32) {
    %c0_i32 = arith.constant 0 : i32
    %c0_i32_0 = arith.constant 0 : i32
    return %c0_i32, %arg0 : i32, i32
  }
  func.func @transform_3(%arg0: i32) -> (i32, i32) {
    %c0_i32 = arith.constant 0 : i32
    %c0_i32_0 = arith.constant 0 : i32
    return %c0_i32, %arg0 : i32, i32
  }
}

</mosaic_0001>

<llo_original>
// kernel: parallel_lm_head.1
$region0: #{parallel_lm_head.1}
  #allocation0 [shape = 'u32[]', space=smem, size = 0x4, offset = 0x4, fixed_abs, tag = 'smem constant byte address 0x4 - core index']
  #allocation1 [shape = 'u32[144,128]{1,0:T(1,128)}', space=vmem, size = 0x12000, scoped, tag = 'internal scratch']
  %s0 = inlined_call_operand.vmem [shape: bf16[3,128], index: 0, kind: input, shape index: {}]
  %s1 = inlined_call_operand.hbm [shape: bf16[1,128,1024], index: 1, kind: input, shape index: {}]
  %s2 = inlined_call_operand.vmem [shape: f32[1,1024], index: 2, kind: input, shape index: {}]
  %s3 = inlined_call_operand.hbm [shape: bf16[3,1024], index: 3, kind: output, shape index: {}]
  %s4 = sld [smem:[#allocation0]]
  $region26: #{parallel_lm_head.1} parent=0
    _
  %s6 = ssub.s32 1, %s4
  %s7 = scalar_select 0, %s6, %s4
  $region1: #{parallel_lm_head.1} parent=0
    #allocation2 [shape = 'u8[262144]{0}', space=vmem, size = 0x40000, scoped, tag = 'input window, operand 1, single buffered']
    #allocation3 [shape = 's32[1]{0}', space=sflag, size = 0x4, scoped, tag = 'scoped memory for parallel_lm_head.1']
    #allocation4 [shape = 's32[1]{0}', space=sflag, size = 0x4, scoped, tag = 'scoped memory for parallel_lm_head.1']
    #allocation5 [shape = 'u8[8192]{0}', space=vmem, size = 0x2000, scoped, tag = 'output window, operand 0, single buffered']
    %8 = vsyncpa [#allocation3], 0
    %9 = vsyncpa [#allocation4], 0
    // Predicated region
    $region2: #{parallel_lm_head.1} parent=1 // pred_check
      _
    $region3: #{parallel_lm_head.1} parent=1 // pred_check_branch
      %11 = sbr.rel (0) target = $region5
    $region4: #{parallel_lm_head.1} parent=1 // pred_region
      _
    $region5: #{parallel_lm_head.1} parent=1 // pred_fallthru
      _
    // Predicated region
    $region6: #{parallel_lm_head.1} parent=1 // pred_check
      _
    $region7: #{parallel_lm_head.1} parent=1 // pred_check_branch
      %13 = sbr.rel (0) target = $region9
    $region8: #{parallel_lm_head.1} parent=1 // pred_region
      %s15 = ssub.s32 8192, 8192
      %16 = vsyncadd [#allocation3], %s15
      %s17 = sshll.u32 [#allocation2], 4
      %s18 = int_to_ptr.vmem [resolvable:$true] %s17
      %23 = dma.hbm_to_vmem [thread:$0]  %s1, 8192, %s18, [#allocation3], 512, 512, 32
    $region9: #{parallel_lm_head.1} parent=1 // pred_fallthru
      _
    // Predicated region
    $region10: #{parallel_lm_head.1} parent=1 // pred_check
      _
    $region11: #{parallel_lm_head.1} parent=1 // pred_check_branch
      %25 = sbr.rel (0) target = $region13
    $region12: #{parallel_lm_head.1} parent=1 // pred_region
      _
    $region13: #{parallel_lm_head.1} parent=1 // pred_fallthru
      _
    // Predicated region
    $region14: #{parallel_lm_head.1} parent=1 // pred_check
      _
    $region15: #{parallel_lm_head.1} parent=1 // pred_check_branch
      %27 = sbr.rel (0) target = $region17
    $region16: #{parallel_lm_head.1} parent=1 // pred_region
      %28 = dma.done [#allocation3], 8192
    $region17: #{parallel_lm_head.1} parent=1 // pred_fallthru
      _
    %v30 = vld [vmem:[%s0] sm:$0x3]
    %v31 = vld [vmem:[#allocation2] sm:$0xff]
    %v32 = vld [vmem:[#allocation2 + $0x8] sm:$0xff]
    %v33 = vld [vmem:[#allocation2 + $0x10] sm:$0xff]
    %v34 = vld [vmem:[#allocation2 + $0x18] sm:$0xff]
    %v35 = vld [vmem:[#allocation2 + $0x20] sm:$0xff]
    %v36 = vld [vmem:[#allocation2 + $0x28] sm:$0xff]
    %v37 = vld [vmem:[#allocation2 + $0x30] sm:$0xff]
    %v38 = vld [vmem:[#allocation2 + $0x38] sm:$0xff]
    %v39 = vld [vmem:[#allocation2 + $0x40] sm:$0xff]
    %v40 = vld [vmem:[#allocation2 + $0x48] sm:$0xff]
    %v41 = vld [vmem:[#allocation2 + $0x50] sm:$0xff]
    %v42 = vld [vmem:[#allocation2 + $0x58] sm:$0xff]
    %v43 = vld [vmem:[#allocation2 + $0x60] sm:$0xff]
    %v44 = vld [vmem:[#allocation2 + $0x68] sm:$0xff]
    %v45 = vld [vmem:[#allocation2 + $0x70] sm:$0xff]
    %v46 = vld [vmem:[#allocation2 + $0x78] sm:$0xff]
    %v47 = vld [vmem:[#allocation2 + $0x80] sm:$0xff]
    %v48 = vld [vmem:[#allocation2 + $0x88] sm:$0xff]
    %v49 = vld [vmem:[#allocation2 + $0x90] sm:$0xff]
    %v50 = vld [vmem:[#allocation2 + $0x98] sm:$0xff]
    %v51 = vld [vmem:[#allocation2 + $0xa0] sm:$0xff]
    %v52 = vld [vmem:[#allocation2 + $0xa8] sm:$0xff]
    %v53 = vld [vmem:[#allocation2 + $0xb0] sm:$0xff]
    %v54 = vld [vmem:[#allocation2 + $0xb8] sm:$0xff]
    %v55 = vld [vmem:[#allocation2 + $0xc0] sm:$0xff]
    %v56 = vld [vmem:[#allocation2 + $0xc8] sm:$0xff]
    %v57 = vld [vmem:[#allocation2 + $0xd0] sm:$0xff]
    %v58 = vld [vmem:[#allocation2 + $0xd8] sm:$0xff]
    %v59 = vld [vmem:[#allocation2 + $0xe0] sm:$0xff]
    %v60 = vld [vmem:[#allocation2 + $0xe8] sm:$0xff]
    %v61 = vld [vmem:[#allocation2 + $0xf0] sm:$0xff]
    %v62 = vld [vmem:[#allocation2 + $0xf8] sm:$0xff]
    %v63 = vld [vmem:[#allocation2 + $0x100] sm:$0xff]
    %v64 = vld [vmem:[#allocation2 + $0x108] sm:$0xff]
    %v65 = vld [vmem:[#allocation2 + $0x110] sm:$0xff]
    %v66 = vld [vmem:[#allocation2 + $0x118] sm:$0xff]
    %v67 = vld [vmem:[#allocation2 + $0x120] sm:$0xff]
    %v68 = vld [vmem:[#allocation2 + $0x128] sm:$0xff]
    %v69 = vld [vmem:[#allocation2 + $0x130] sm:$0xff]
    %v70 = vld [vmem:[#allocation2 + $0x138] sm:$0xff]
    %v71 = vld [vmem:[#allocation2 + $0x140] sm:$0xff]
    %v72 = vld [vmem:[#allocation2 + $0x148] sm:$0xff]
    %v73 = vld [vmem:[#allocation2 + $0x150] sm:$0xff]
    %v74 = vld [vmem:[#allocation2 + $0x158] sm:$0xff]
    %v75 = vld [vmem:[#allocation2 + $0x160] sm:$0xff]
    %v76 = vld [vmem:[#allocation2 + $0x168] sm:$0xff]
    %v77 = vld [vmem:[#allocation2 + $0x170] sm:$0xff]
    %v78 = vld [vmem:[#allocation2 + $0x178] sm:$0xff]
    %v79 = vld [vmem:[#allocation2 + $0x180] sm:$0xff]
    %v80 = vld [vmem:[#allocation2 + $0x188] sm:$0xff]
    %v81 = vld [vmem:[#allocation2 + $0x190] sm:$0xff]
    %v82 = vld [vmem:[#allocation2 + $0x198] sm:$0xff]
    %v83 = vld [vmem:[#allocation2 + $0x1a0] sm:$0xff]
    %v84 = vld [vmem:[#allocation2 + $0x1a8] sm:$0xff]
    %v85 = vld [vmem:[#allocation2 + $0x1b0] sm:$0xff]
    %v86 = vld [vmem:[#allocation2 + $0x1b8] sm:$0xff]
    %v87 = vld [vmem:[#allocation2 + $0x1c0] sm:$0xff]
    %v88 = vld [vmem:[#allocation2 + $0x1c8] sm:$0xff]
    %v89 = vld [vmem:[#allocation2 + $0x1d0] sm:$0xff]
    %v90 = vld [vmem:[#allocation2 + $0x1d8] sm:$0xff]
    %v91 = vld [vmem:[#allocation2 + $0x1e0] sm:$0xff]
    %v92 = vld [vmem:[#allocation2 + $0x1e8] sm:$0xff]
    %v93 = vld [vmem:[#allocation2 + $0x1f0] sm:$0xff]
    %v94 = vld [vmem:[#allocation2 + $0x1f8] sm:$0xff]
    %v95 = vld [vmem:[%s2] sm:$0xff]
    %v97 = vlaneseq
    %v98 = vshrl.u32 %v97, 7
    %v99 = vsub.s32 0, %v98
    %v100 = vrot.slane %v95, %v99
    %v101 = vlaneseq
    %v102 = vshrl.u32 %v101, 7
    %v103 = vsub.s32 1, %v102
    %v104 = vrot.slane %v95, %v103
    %v105 = vlaneseq
    %v106 = vshrl.u32 %v105, 7
    %v107 = vsub.s32 2, %v106
    %v108 = vrot.slane %v95, %v107
    %v109 = vlaneseq
    %v110 = vshrl.u32 %v109, 7
    %v111 = vsub.s32 3, %v110
    %v112 = vrot.slane %v95, %v111
    %v113 = vlaneseq
    %v114 = vshrl.u32 %v113, 7
    %v115 = vsub.s32 4, %v114
    %v116 = vrot.slane %v95, %v115
    %v117 = vlaneseq
    %v118 = vshrl.u32 %v117, 7
    %v119 = vsub.s32 5, %v118
    %v120 = vrot.slane %v95, %v119
    %v121 = vlaneseq
    %v122 = vshrl.u32 %v121, 7
    %v123 = vsub.s32 6, %v122
    %v124 = vrot.slane %v95, %v123
    %v125 = vlaneseq
    %v126 = vshrl.u32 %v125, 7
    %v127 = vsub.s32 7, %v126
    %v128 = vrot.slane %v95, %v127
    %v201 = vunpack.c.l.b16 %v31
    %v202 = vunpack.c.h.b16 %v31
    %v203 = vunpack.c.l.b16 %v32
    %v204 = vunpack.c.h.b16 %v32
    %v205 = vunpack.c.l.b16 %v33
    %v206 = vunpack.c.h.b16 %v33
    %v207 = vunpack.c.l.b16 %v34
    %v208 = vunpack.c.h.b16 %v34
    %v209 = vunpack.c.l.b16 %v35
    %v210 = vunpack.c.h.b16 %v35
    %v211 = vunpack.c.l.b16 %v36
    %v212 = vunpack.c.h.b16 %v36
    %v213 = vunpack.c.l.b16 %v37
    %v214 = vunpack.c.h.b16 %v37
    %v215 = vunpack.c.l.b16 %v38
    %v216 = vunpack.c.h.b16 %v38
    %v217 = vunpack.c.l.b16 %v39
    %v218 = vunpack.c.h.b16 %v39
    %v219 = vunpack.c.l.b16 %v40
    %v220 = vunpack.c.h.b16 %v40
    %v221 = vunpack.c.l.b16 %v41
    %v222 = vunpack.c.h.b16 %v41
    %v223 = vunpack.c.l.b16 %v42
    %v224 = vunpack.c.h.b16 %v42
    %v225 = vunpack.c.l.b16 %v43
    %v226 = vunpack.c.h.b16 %v43
    %v227 = vunpack.c.l.b16 %v44
    %v228 = vunpack.c.h.b16 %v44
    %v229 = vunpack.c.l.b16 %v45
    %v230 = vunpack.c.h.b16 %v45
    %v231 = vunpack.c.l.b16 %v46
    %v232 = vunpack.c.h.b16 %v46
    %v233 = vunpack.c.l.b16 %v47
    %v234 = vunpack.c.h.b16 %v47
    %v235 = vunpack.c.l.b16 %v48
    %v236 = vunpack.c.h.b16 %v48
    %v237 = vunpack.c.l.b16 %v49
    %v238 = vunpack.c.h.b16 %v49
    %v239 = vunpack.c.l.b16 %v50
    %v240 = vunpack.c.h.b16 %v50
    %v241 = vunpack.c.l.b16 %v51
    %v242 = vunpack.c.h.b16 %v51
    %v243 = vunpack.c.l.b16 %v52
    %v244 = vunpack.c.h.b16 %v52
    %v245 = vunpack.c.l.b16 %v53
    %v246 = vunpack.c.h.b16 %v53
    %v247 = vunpack.c.l.b16 %v54
    %v248 = vunpack.c.h.b16 %v54
    %v249 = vunpack.c.l.b16 %v55
    %v250 = vunpack.c.h.b16 %v55
    %v251 = vunpack.c.l.b16 %v56
    %v252 = vunpack.c.h.b16 %v56
    %v253 = vunpack.c.l.b16 %v57
    %v254 = vunpack.c.h.b16 %v57
    %v255 = vunpack.c.l.b16 %v58
    %v256 = vunpack.c.h.b16 %v58
    %v257 = vunpack.c.l.b16 %v59
    %v258 = vunpack.c.h.b16 %v59
    %v259 = vunpack.c.l.b16 %v60
    %v260 = vunpack.c.h.b16 %v60
    %v261 = vunpack.c.l.b16 %v61
    %v262 = vunpack.c.h.b16 %v61
    %v263 = vunpack.c.l.b16 %v62
    %v264 = vunpack.c.h.b16 %v62
    %v265 = vunpack.c.l.b16 %v63
    %v266 = vunpack.c.h.b16 %v63
    %v267 = vunpack.c.l.b16 %v64
    %v268 = vunpack.c.h.b16 %v64
    %v269 = vunpack.c.l.b16 %v65
    %v270 = vunpack.c.h.b16 %v65
    %v271 = vunpack.c.l.b16 %v66
    %v272 = vunpack.c.h.b16 %v66
    %v273 = vunpack.c.l.b16 %v67
    %v274 = vunpack.c.h.b16 %v67
    %v275 = vunpack.c.l.b16 %v68
    %v276 = vunpack.c.h.b16 %v68
    %v277 = vunpack.c.l.b16 %v69
    %v278 = vunpack.c.h.b16 %v69
    %v279 = vunpack.c.l.b16 %v70
    %v280 = vunpack.c.h.b16 %v70
    %v281 = vunpack.c.l.b16 %v71
    %v282 = vunpack.c.h.b16 %v71
    %v283 = vunpack.c.l.b16 %v72
    %v284 = vunpack.c.h.b16 %v72
    %v285 = vunpack.c.l.b16 %v73
    %v286 = vunpack.c.h.b16 %v73
    %v287 = vunpack.c.l.b16 %v74
    %v288 = vunpack.c.h.b16 %v74
    %v289 = vunpack.c.l.b16 %v75
    %v290 = vunpack.c.h.b16 %v75
    %v291 = vunpack.c.l.b16 %v76
    %v292 = vunpack.c.h.b16 %v76
    %v293 = vunpack.c.l.b16 %v77
    %v294 = vunpack.c.h.b16 %v77
    %v295 = vunpack.c.l.b16 %v78
    %v296 = vunpack.c.h.b16 %v78
    %v297 = vunpack.c.l.b16 %v79
    %v298 = vunpack.c.h.b16 %v79
    %v299 = vunpack.c.l.b16 %v80
    %v300 = vunpack.c.h.b16 %v80
    %v301 = vunpack.c.l.b16 %v81
    %v302 = vunpack.c.h.b16 %v81
    %v303 = vunpack.c.l.b16 %v82
    %v304 = vunpack.c.h.b16 %v82
    %v305 = vunpack.c.l.b16 %v83
    %v306 = vunpack.c.h.b16 %v83
    %v307 = vunpack.c.l.b16 %v84
    %v308 = vunpack.c.h.b16 %v84
    %v309 = vunpack.c.l.b16 %v85
    %v310 = vunpack.c.h.b16 %v85
    %v311 = vunpack.c.l.b16 %v86
    %v312 = vunpack.c.h.b16 %v86
    %v313 = vunpack.c.l.b16 %v87
    %v314 = vunpack.c.h.b16 %v87
    %v315 = vunpack.c.l.b16 %v88
    %v316 = vunpack.c.h.b16 %v88
    %v317 = vunpack.c.l.b16 %v89
    %v318 = vunpack.c.h.b16 %v89
    %v319 = vunpack.c.l.b16 %v90
    %v320 = vunpack.c.h.b16 %v90
    %v321 = vunpack.c.l.b16 %v91
    %v322 = vunpack.c.h.b16 %v91
    %v323 = vunpack.c.l.b16 %v92
    %v324 = vunpack.c.h.b16 %v92
    %v325 = vunpack.c.l.b16 %v93
    %v326 = vunpack.c.h.b16 %v93
    %v327 = vunpack.c.l.b16 %v94
    %v328 = vunpack.c.h.b16 %v94
    %v329 = vpack.c.b16 %v209, %v201
    %v330 = vpack.c.b16 %v210, %v202
    %v331 = vpack.c.b16 %v211, %v203
    %v332 = vpack.c.b16 %v212, %v204
    %v333 = vpack.c.b16 %v213, %v205
    %v334 = vpack.c.b16 %v214, %v206
    %v335 = vpack.c.b16 %v215, %v207
    %v336 = vpack.c.b16 %v216, %v208
    %v337 = vpack.c.b16 %v225, %v217
    %v338 = vpack.c.b16 %v226, %v218
    %v339 = vpack.c.b16 %v227, %v219
    %v340 = vpack.c.b16 %v228, %v220
    %v341 = vpack.c.b16 %v229, %v221
    %v342 = vpack.c.b16 %v230, %v222
    %v343 = vpack.c.b16 %v231, %v223
    %v344 = vpack.c.b16 %v232, %v224
    %v345 = vpack.c.b16 %v241, %v233
    %v346 = vpack.c.b16 %v242, %v234
    %v347 = vpack.c.b16 %v243, %v235
    %v348 = vpack.c.b16 %v244, %v236
    %v349 = vpack.c.b16 %v245, %v237
    %v350 = vpack.c.b16 %v246, %v238
    %v351 = vpack.c.b16 %v247, %v239
    %v352 = vpack.c.b16 %v248, %v240
    %v353 = vpack.c.b16 %v257, %v249
    %v354 = vpack.c.b16 %v258, %v250
    %v355 = vpack.c.b16 %v259, %v251
    %v356 = vpack.c.b16 %v260, %v252
    %v357 = vpack.c.b16 %v261, %v253
    %v358 = vpack.c.b16 %v262, %v254
    %v359 = vpack.c.b16 %v263, %v255
    %v360 = vpack.c.b16 %v264, %v256
    %v361 = vpack.c.b16 %v273, %v265
    %v362 = vpack.c.b16 %v274, %v266
    %v363 = vpack.c.b16 %v275, %v267
    %v364 = vpack.c.b16 %v276, %v268
    %v365 = vpack.c.b16 %v277, %v269
    %v366 = vpack.c.b16 %v278, %v270
    %v367 = vpack.c.b16 %v279, %v271
    %v368 = vpack.c.b16 %v280, %v272
    %v369 = vpack.c.b16 %v289, %v281
    %v370 = vpack.c.b16 %v290, %v282
    %v371 = vpack.c.b16 %v291, %v283
    %v372 = vpack.c.b16 %v292, %v284
    %v373 = vpack.c.b16 %v293, %v285
    %v374 = vpack.c.b16 %v294, %v286
    %v375 = vpack.c.b16 %v295, %v287
    %v376 = vpack.c.b16 %v296, %v288
    %v377 = vpack.c.b16 %v305, %v297
    %v378 = vpack.c.b16 %v306, %v298
    %v379 = vpack.c.b16 %v307, %v299
    %v380 = vpack.c.b16 %v308, %v300
    %v381 = vpack.c.b16 %v309, %v301
    %v382 = vpack.c.b16 %v310, %v302
    %v383 = vpack.c.b16 %v311, %v303
    %v384 = vpack.c.b16 %v312, %v304
    %v385 = vpack.c.b16 %v321, %v313
    %v386 = vpack.c.b16 %v322, %v314
    %v387 = vpack.c.b16 %v323, %v315
    %v388 = vpack.c.b16 %v324, %v316
    %v389 = vpack.c.b16 %v325, %v317
    %v390 = vpack.c.b16 %v326, %v318
    %v391 = vpack.c.b16 %v327, %v319
    %v392 = vpack.c.b16 %v328, %v320
    %457 = vmatprep.subr.bf16.mxu0 %v330
    %458 = vmatpush1.bf16.msra.mxu0 %v329
    %459 = vmatprep.subr.bf16.mxu0 %v338
    %460 = vmatpush1.bf16.msra.mxu0 %v337
    %461 = vmatprep.subr.bf16.mxu0 %v346
    %462 = vmatpush1.bf16.msra.mxu0 %v345
    %463 = vmatprep.subr.bf16.mxu0 %v354
    %464 = vmatpush1.bf16.msra.mxu0 %v353
    %465 = vmatprep.subr.bf16.mxu0 %v362
    %466 = vmatpush1.bf16.msra.mxu0 %v361
    %467 = vmatprep.subr.bf16.mxu0 %v370
    %468 = vmatpush1.bf16.msra.mxu0 %v369
    %469 = vmatprep.subr.bf16.mxu0 %v378
    %470 = vmatpush1.bf16.msra.mxu0 %v377
    %471 = vmatprep.subr.bf16.mxu0 %v386
    %472 = vmatpush1.bf16.msra.mxu0 %v385
    %473 = vmatprep.subr.bf16.mxu0 0
    %474 = vmatpush1.bf16.msra.mxu0 0
    %475 = vmatprep.subr.bf16.mxu0 0
    %476 = vmatpush1.bf16.msra.mxu0 0
    %477 = vmatprep.subr.bf16.mxu0 0
    %478 = vmatpush1.bf16.msra.mxu0 0
    %479 = vmatprep.subr.bf16.mxu0 0
    %480 = vmatpush1.bf16.msra.mxu0 0
    %481 = vmatprep.subr.bf16.mxu0 0
    %482 = vmatpush1.bf16.msra.mxu0 0
    %483 = vmatprep.subr.bf16.mxu0 0
    %484 = vmatpush1.bf16.msra.mxu0 0
    %485 = vmatprep.subr.bf16.mxu0 0
    %486 = vmatpush1.bf16.msra.mxu0 0
    %487 = vmatprep.subr.bf16.mxu0 0
    %488 = vmatpush1.bf16.msra.mxu0 0
    %489 = vmatprep.mubr.bf16.mxu0 0
    %490 = vmatmul.mubr.bf16.gmra.mrb[0].mxu0 %v30
    %v491 = vpop.f32.mrb[0].mxu0
    %v492 = vadd.f32 %v100, %v491
    %v493 = vpop.f32.mrb[0].mxu0
    %v494 = vadd.f32 %v104, %v493
    %v495 = vpop.f32.mrb[0].mxu0
    %v496 = vpop.f32.mrb[0].mxu0
    %497 = vdwg.mxu0
    %498 = vmatprep.subr.bf16.mxu0 %v332
    %499 = vmatpush1.bf16.msra.mxu0 %v331
    %500 = vmatprep.subr.bf16.mxu0 %v340
    %501 = vmatpush1.bf16.msra.mxu0 %v339
    %502 = vmatprep.subr.bf16.mxu0 %v348
    %503 = vmatpush1.bf16.msra.mxu0 %v347
    %504 = vmatprep.subr.bf16.mxu0 %v356
    %505 = vmatpush1.bf16.msra.mxu0 %v355
    %506 = vmatprep.subr.bf16.mxu0 %v364
    %507 = vmatpush1.bf16.msra.mxu0 %v363
    %508 = vmatprep.subr.bf16.mxu0 %v372
    %509 = vmatpush1.bf16.msra.mxu0 %v371
    %510 = vmatprep.subr.bf16.mxu0 %v380
    %511 = vmatpush1.bf16.msra.mxu0 %v379
    %512 = vmatprep.subr.bf16.mxu0 %v388
    %513 = vmatpush1.bf16.msra.mxu0 %v387
    %514 = vmatprep.subr.bf16.mxu0 0
    %515 = vmatpush1.bf16.msra.mxu0 0
    %516 = vmatprep.subr.bf16.mxu0 0
    %517 = vmatpush1.bf16.msra.mxu0 0
    %518 = vmatprep.subr.bf16.mxu0 0
    %519 = vmatpush1.bf16.msra.mxu0 0
    %520 = vmatprep.subr.bf16.mxu0 0
    %521 = vmatpush1.bf16.msra.mxu0 0
    %522 = vmatprep.subr.bf16.mxu0 0
    %523 = vmatpush1.bf16.msra.mxu0 0
    %524 = vmatprep.subr.bf16.mxu0 0
    %525 = vmatpush1.bf16.msra.mxu0 0
    %526 = vmatprep.subr.bf16.mxu0 0
    %527 = vmatpush1.bf16.msra.mxu0 0
    %528 = vmatprep.subr.bf16.mxu0 0
    %529 = vmatpush1.bf16.msra.mxu0 0
    %530 = vmatprep.mubr.bf16.mxu0 0
    %531 = vmatmul.mubr.bf16.gmra.mrb[0].mxu0 %v30
    %v532 = vpop.f32.mrb[0].mxu0
    %v533 = vadd.f32 %v108, %v532
    %v534 = vpop.f32.mrb[0].mxu0
    %v535 = vadd.f32 %v112, %v534
    %v536 = vpop.f32.mrb[0].mxu0
    %v537 = vpop.f32.mrb[0].mxu0
    %538 = vdwg.mxu0
    %539 = vmatprep.subr.bf16.mxu0 %v334
    %540 = vmatpush1.bf16.msra.mxu0 %v333
    %541 = vmatprep.subr.bf16.mxu0 %v342
    %542 = vmatpush1.bf16.msra.mxu0 %v341
    %543 = vmatprep.subr.bf16.mxu0 %v350
    %544 = vmatpush1.bf16.msra.mxu0 %v349
    %545 = vmatprep.subr.bf16.mxu0 %v358
    %546 = vmatpush1.bf16.msra.mxu0 %v357
    %547 = vmatprep.subr.bf16.mxu0 %v366
    %548 = vmatpush1.bf16.msra.mxu0 %v365
    %549 = vmatprep.subr.bf16.mxu0 %v374
    %550 = vmatpush1.bf16.msra.mxu0 %v373
    %551 = vmatprep.subr.bf16.mxu0 %v382
    %552 = vmatpush1.bf16.msra.mxu0 %v381
    %553 = vmatprep.subr.bf16.mxu0 %v390
    %554 = vmatpush1.bf16.msra.mxu0 %v389
    %555 = vmatprep.subr.bf16.mxu0 0
    %556 = vmatpush1.bf16.msra.mxu0 0
    %557 = vmatprep.subr.bf16.mxu0 0
    %558 = vmatpush1.bf16.msra.mxu0 0
    %559 = vmatprep.subr.bf16.mxu0 0
    %560 = vmatpush1.bf16.msra.mxu0 0
    %561 = vmatprep.subr.bf16.mxu0 0
    %562 = vmatpush1.bf16.msra.mxu0 0
    %563 = vmatprep.subr.bf16.mxu0 0
    %564 = vmatpush1.bf16.msra.mxu0 0
    %565 = vmatprep.subr.bf16.mxu0 0
    %566 = vmatpush1.bf16.msra.mxu0 0
    %567 = vmatprep.subr.bf16.mxu0 0
    %568 = vmatpush1.bf16.msra.mxu0 0
    %569 = vmatprep.subr.bf16.mxu0 0
    %570 = vmatpush1.bf16.msra.mxu0 0
    %571 = vmatprep.mubr.bf16.mxu0 0
    %572 = vmatmul.mubr.bf16.gmra.mrb[0].mxu0 %v30
    %v573 = vpop.f32.mrb[0].mxu0
    %v574 = vadd.f32 %v116, %v573
    %v575 = vpop.f32.mrb[0].mxu0
    %v576 = vadd.f32 %v120, %v575
    %v577 = vpop.f32.mrb[0].mxu0
    %v578 = vpop.f32.mrb[0].mxu0
    %579 = vdwg.mxu0
    %580 = vmatprep.subr.bf16.mxu0 %v336
    %581 = vmatpush1.bf16.msra.mxu0 %v335
    %582 = vmatprep.subr.bf16.mxu0 %v344
    %583 = vmatpush1.bf16.msra.mxu0 %v343
    %584 = vmatprep.subr.bf16.mxu0 %v352
    %585 = vmatpush1.bf16.msra.mxu0 %v351
    %586 = vmatprep.subr.bf16.mxu0 %v360
    %587 = vmatpush1.bf16.msra.mxu0 %v359
    %588 = vmatprep.subr.bf16.mxu0 %v368
    %589 = vmatpush1.bf16.msra.mxu0 %v367
    %590 = vmatprep.subr.bf16.mxu0 %v376
    %591 = vmatpush1.bf16.msra.mxu0 %v375
    %592 = vmatprep.subr.bf16.mxu0 %v384
    %593 = vmatpush1.bf16.msra.mxu0 %v383
    %594 = vmatprep.subr.bf16.mxu0 %v392
    %595 = vmatpush1.bf16.msra.mxu0 %v391
    %596 = vmatprep.subr.bf16.mxu0 0
    %597 = vmatpush1.bf16.msra.mxu0 0
    %598 = vmatprep.subr.bf16.mxu0 0
    %599 = vmatpush1.bf16.msra.mxu0 0
    %600 = vmatprep.subr.bf16.mxu0 0
    %601 = vmatpush1.bf16.msra.mxu0 0
    %602 = vmatprep.subr.bf16.mxu0 0
    %603 = vmatpush1.bf16.msra.mxu0 0
    %604 = vmatprep.subr.bf16.mxu0 0
    %605 = vmatpush1.bf16.msra.mxu0 0
    %606 = vmatprep.subr.bf16.mxu0 0
    %607 = vmatpush1.bf16.msra.mxu0 0
    %608 = vmatprep.subr.bf16.mxu0 0
    %609 = vmatpush1.bf16.msra.mxu0 0
    %610 = vmatprep.subr.bf16.mxu0 0
    %611 = vmatpush1.bf16.msra.mxu0 0
    %612 = vmatprep.mubr.bf16.mxu0 0
    %613 = vmatmul.mubr.bf16.gmra.mrb[0].mxu0 %v30
    %v614 = vpop.f32.mrb[0].mxu0
    %v615 = vadd.f32 %v124, %v614
    %v616 = vpop.f32.mrb[0].mxu0
    %v617 = vadd.f32 %v128, %v616
    %v618 = vpop.f32.mrb[0].mxu0
    %v619 = vpop.f32.mrb[0].mxu0
    %620 = vdwg.mxu0
    %v621 = vpack.c.bf16 %v492, %v492
    %v622 = vpack.c.bf16 %v494, %v494
    %v623 = vpack.c.bf16 %v533, %v533
    %v624 = vpack.c.bf16 %v535, %v535
    %v625 = vpack.c.bf16 %v574, %v574
    %v626 = vpack.c.bf16 %v576, %v576
    %v627 = vpack.c.bf16 %v615, %v615
    %v628 = vpack.c.bf16 %v617, %v617
    %v637 = vcombine.low %v621, %v622
    %v638 = vcombine.low %v623, %v624
    %v640 = vunpack.c.l.s4 1983009808
    %v641 = vunpack.c.0.s8 %v640
    %v642 = vlaneseq
    %v643 = vshrl.u32 %v642, 7
    %v644 = vsub.s32 %v641, %v643
    %v645 = vrot.slane %v637, %v644
    %v647 = vunpack.c.l.s4 1983009808
    %v648 = vunpack.c.0.s8 %v647
    %v649 = vlaneseq
    %v650 = vshrl.u32 %v649, 7
    %v651 = vsub.s32 %v648, %v650
    %v652 = vrot.slane %v638, %v651
    %v653 = vcombine.low %v645, %v652
    %v654 = vcombine.low %v625, %v626
    %v655 = vcombine.low %v627, %v628
    %v657 = vunpack.c.l.s4 1983009808
    %v658 = vunpack.c.0.s8 %v657
    %v659 = vlaneseq
    %v660 = vshrl.u32 %v659, 7
    %v661 = vsub.s32 %v658, %v660
    %v662 = vrot.slane %v654, %v661
    %v664 = vunpack.c.l.s4 1983009808
    %v665 = vunpack.c.0.s8 %v664
    %v666 = vlaneseq
    %v667 = vshrl.u32 %v666, 7
    %v668 = vsub.s32 %v665, %v667
    %v669 = vrot.slane %v655, %v668
    %v670 = vcombine.low %v662, %v669
    %vm673 = vcmask 1041408
    %vm674 = vsmask.f32 1280
    %vm675 = vmand %vm673, %vm674
    %vm676 = vcmask 1043458
    %vm677 = vsmask.f32 3328
    %vm678 = vmand %vm676, %vm677
    %vm679 = vmor %vm678, %vm675
    %vm680 = vcmask 1045508
    %vm681 = vsmask.f32 5376
    %vm682 = vmand %vm680, %vm681
    %vm683 = vmor %vm682, %vm679
    %vm684 = vcmask 1047558
    %vm685 = vsmask.f32 7424
    %vm686 = vmand %vm684, %vm685
    %vm687 = vmor %vm686, %vm683
    %v688 = vld [vmem:[#allocation5] sm:$0xff]
    %v689 = vsel %vm687, %v653, %v688
    %690 = vst [vmem:[#allocation5] sm:$0xff] %v689
    %v691 = vld [vmem:[#allocation5 + $0x8] sm:$0xff]
    %v692 = vsel %vm687, %v670, %v691
    %693 = vst [vmem:[#allocation5 + $0x8] sm:$0xff] %v692
    // Predicated region
    $region18: #{parallel_lm_head.1} parent=1 // pred_check
      _
    $region19: #{parallel_lm_head.1} parent=1 // pred_check_branch
      %695 = sbr.rel (0) target = $region21
    $region20: #{parallel_lm_head.1} parent=1 // pred_region
      %s697 = ssub.s32 256, 256
      %698 = vsyncadd [#allocation4], %s697
      %s700 = sshll.u32 [#allocation5], 4
      %s701 = int_to_ptr.vmem [resolvable:$true] %s700
      %703 = dma.vmem_to_hbm [thread:$0]  %s701, 256, %s3, [#allocation4]
    $region21: #{parallel_lm_head.1} parent=1 // pred_fallthru
      _
    // Predicated region
    $region22: #{parallel_lm_head.1} parent=1 // pred_check
      _
    $region23: #{parallel_lm_head.1} parent=1 // pred_check_branch
      %705 = sbr.rel (0) target = $region25
    $region24: #{parallel_lm_head.1} parent=1 // pred_region
      %706 = dma.done [#allocation4], 256
    $region25: #{parallel_lm_head.1} parent=1 // pred_fallthru
      _
    %707 = vsyncpa [#allocation3], 1
    %708 = vsyncpa [#allocation4], 1

</llo_original>
